<compile_context>
chip_gen: v7x
topology: tpu7x:2x2x1
jax: 0.10.0
libtpu: 0.0.40
codegen_flags: <defaults>
</compile_context>

<pallas_src>
import functools

import numpy as np
import jax
import jax.numpy as jnp
from jax.experimental import pallas as pl
from jax.experimental.pallas import tpu as pltpu

KSIZE = 7
PAD = 3
RPAD = 128  # lane-friendly padding of the MLP bottleneck (C // r)


@functools.cache
def _roll_sign():
    """One-time probe: does pltpu.roll match jnp.roll's shift direction?

    Kept (cached) instead of hardcoding so the kernel is correct regardless of
    the lowering's rotate direction; it costs one tiny compile at build time.
    """
    x = jnp.arange(8 * 128, dtype=jnp.float32).reshape(8, 128)

    def _probe(x_ref, o_ref):
        o_ref[...] = pltpu.roll(x_ref[...], 1, axis=1)

    out = pl.pallas_call(
        _probe, out_shape=jax.ShapeDtypeStruct((8, 128), jnp.float32))(x)
    out = jax.block_until_ready(out)
    # jnp.roll semantics: out[0, 1] == x[0, 0]
    return 1 if float(out[0, 1]) == float(x[0, 0]) else -1


def _roll_lanes(x, shift, roll_sign):
    """result[..., l] = x[..., (l - shift) mod width]  (jnp.roll semantics)."""
    width = x.shape[-1]
    amt = (roll_sign * shift) % width
    if amt == 0:
        return x
    return pltpu.roll(x, amt, axis=x.ndim - 1)


def _cbam_kernel(x_ref, w1_ref, w2_ref, mask_ref, wc_ref, o_ref, *, roll_sign):
    # x_ref: (Bt, H, WC) lane-dense block (io dtype, possibly bf16).
    Bt, H, WC = x_ref.shape
    C = w1_ref.shape[0]
    W = WC // C
    p = 1 << (W.bit_length() - 1)          # largest power of two <= W

    # ---------------- H-pooled per-(w,c) stats -----------------------------
    # Read the block once for the reductions; it is re-read at the final store
    # so the full (Bt,H,WC) value is never live across the MLP + conv section.
    xb = x_ref[...].astype(jnp.float32)
    s_h = jnp.sum(xb, axis=1)                        # (Bt, WC) f32
    m_h = jnp.max(xb, axis=1)                        # (Bt, WC) f32

    # ---------------- Channel attention ------------------------------------
    # Fold the W lane-groups into group 0 with a log2(W) roll tree (+ serial
    # remainder for non-power-of-two W) -- XLU work that co-issues with VALU.
    acc_s, acc_m = s_h, m_h
    shift = C
    while shift < p * C:
        acc_s = acc_s + _roll_lanes(acc_s, -shift, roll_sign)
        acc_m = jnp.maximum(acc_m, _roll_lanes(acc_m, -shift, roll_sign))
        shift *= 2
    for g in range(p, W):
        acc_s = acc_s + _roll_lanes(s_h, -g * C, roll_sign)
        acc_m = jnp.maximum(acc_m, _roll_lanes(m_h, -g * C, roll_sign))
    avg_c = acc_s[:, :C] * (1.0 / (H * W))           # (Bt, C)
    max_c = acc_m[:, :C]                             # (Bt, C)

    pooled = jnp.concatenate([avg_c, max_c], axis=0)                   # (2Bt, C)
    hid = jnp.maximum(
        jnp.dot(pooled, w1_ref[...], preferred_element_type=jnp.float32), 0.0)
    att = jnp.dot(hid, w2_ref[...], preferred_element_type=jnp.float32)  # (2Bt, C)
    catt_c = jax.nn.sigmoid(att[:Bt] + att[Bt:])     # (Bt, C)

    # Broadcast catt to the lane-dense (Bt, WC) layout with a log2(W) roll+add
    # tree (catt zero-padded beyond C so wrapped-in lanes contribute nothing).
    if W > 1:
        catt0 = jnp.concatenate(
            [catt_c, jnp.zeros((Bt, WC - C), jnp.float32)], axis=1)    # group 0 only
        catt = catt0
        shift = C
        while shift < p * C:
            catt = catt + _roll_lanes(catt, shift, roll_sign)
            shift *= 2
        for g in range(p, W):
            catt = catt + _roll_lanes(catt0, g * C, roll_sign)
    else:
        catt = catt_c                                # WC == C

    # ---------------- Spatial attention (PyTorch NHWC quirk) ---------------
    # catt > 0, so mean/max over H of (x * catt) == catt * (mean/max over H of x):
    # reuse s_h / m_h instead of materializing y = x * catt.
    avg_sp = catt * (s_h * (1.0 / H))                # (Bt, WC)
    max_sp = catt * m_h                              # (Bt, WC)
    feats = jnp.concatenate([avg_sp, max_sp], axis=0)                  # (2Bt, WC)

    # 7x7 conv over the (W, C) plane in flat lane coords: kh offsets realized
    # with lane rolls + host-precomputed boundary masks; 7 independent
    # accumulators g[kw] for ILP, seeded with the kh=0 contribution.
    # (Perf option, pending a bundle dump: move this (2,kh) contraction onto
    #  the idle MXU if the VALU slot saturates at large WC.)
    g_acc = [None] * KSIZE
    for kh in range(KSIZE):
        r = _roll_lanes(feats, (PAD - kh) * C, roll_sign)   # rows shifted by kh-3
        r = r * mask_ref[kh:kh + 1, :]                      # zero rows outside [0, W)
        r_avg = r[:Bt]
        r_max = r[Bt:]
        for kw in range(KSIZE):
            w_avg = wc_ref[kh * KSIZE + kw]
            w_max = wc_ref[KSIZE * KSIZE + kh * KSIZE + kw]
            contrib = w_avg * r_avg + w_max * r_max
            g_acc[kw] = contrib if kh == 0 else g_acc[kw] + contrib

    satt_pre = None
    for kw in range(KSIZE):
        term = (_roll_lanes(g_acc[kw], PAD - kw, roll_sign)
                * mask_ref[KSIZE + kw:KSIZE + kw + 1, :])
        satt_pre = term if satt_pre is None else satt_pre + term

    satt = jax.nn.sigmoid(satt_pre)                  # (Bt, WC)
    scale = catt * satt                              # (Bt, WC), broadcast over H

    # Re-read x from VMEM (cheap vld) instead of keeping it live; single fused
    # multiply produces the lane-dense output (unmasked vst when WC % 128 == 0).
    o_ref[...] = (x_ref[...].astype(jnp.float32)
                  * scale[:, None, :]).astype(o_ref.dtype)


def cbam_pallas(x, w1, w2, wconv, io_dtype=jnp.bfloat16):
    """x: (N, H, W, C).  w1: (C, Cr), w2: (Cr, C), wconv: (2, 7, 7)."""
    N, H, W, C = x.shape
    Cr = w1.shape[1]
    WC = W * C
    assert Cr <= RPAD, "MLP bottleneck wider than 128 not supported"
    roll_sign = _roll_sign()

    # Lane-dense view of the tensor: (N, H, W*C) -- free reshape (contiguous).
    # bf16 I/O by default (HBM-bandwidth-bound regime); accumulation stays f32.
    x2 = x.reshape(N, H, WC).astype(io_dtype)

    # fc1 padded to a 128-wide bottleneck (zeros are inert: relu(0)=0 and the
    # matching rows of fc2 are zero).  fc2 stays (128, C): the W-broadcast is
    # done in-kernel with lane rolls instead of a W-tiled weight.
    w1p = jnp.zeros((C, RPAD), jnp.float32).at[:, :Cr].set(w1.astype(jnp.float32))
    w2p = jnp.zeros((RPAD, C), jnp.float32).at[:Cr, :].set(w2.astype(jnp.float32))

    # Host-built conv boundary masks: rows 0..6 gate w+kh-3 in [0, W),
    # rows 7..13 gate c+kw-3 in [0, C)  (flat lane index l = w*C + c).
    lane = np.arange(WC)
    wi, ci = lane // C, lane % C
    row_masks = np.stack([((wi + kh - PAD >= 0) & (wi + kh - PAD < W))
                          for kh in range(KSIZE)]).astype(np.float32)
    col_masks = np.stack([((ci + kw - PAD >= 0) & (ci + kw - PAD < C))
                          for kw in range(KSIZE)]).astype(np.float32)
    masks = jnp.asarray(np.concatenate([row_masks, col_masks], axis=0))  # (14, WC)

    wc_flat = wconv.reshape(-1).astype(jnp.float32)  # (98,) -> SMEM

    # VMEM budget / batch-tile selection.  Query the chip when possible; fall
    # back to the smallest (v7x = 64 MiB) so the limit is always physical-safe.
    try:
        vmem_cap = int(pltpu.get_tpu_info().vmem_capacity_bytes)
    except Exception:
        vmem_cap = 64 * 1024 * 1024
    vmem_limit = int(min(vmem_cap * 3 // 4, 96 * 1024 * 1024))

    io_bytes = jnp.dtype(io_dtype).itemsize
    blk_bytes = H * WC * io_bytes
    # in + out, double-buffered, plus f32 intermediates -> keep one block well
    # under vmem_limit / 8.
    blk_budget = max(blk_bytes, vmem_limit // 8)
    # Keep >= 2 grid steps so v7x's two TensorCores both get work (free on
    # single-TC v5e/v6e: one extra ~0.35 us grid step).
    bt_cap = max(N // 2, 1)
    Bt = 1
    for cand in range(1, bt_cap + 1):
        if N % cand == 0 and cand * blk_bytes <= blk_budget:
            Bt = cand

    out2 = pl.pallas_call(
        functools.partial(_cbam_kernel, roll_sign=roll_sign),
        out_shape=jax.ShapeDtypeStruct((N, H, WC), io_dtype),
        grid_spec=pltpu.PrefetchScalarGridSpec(
            num_scalar_prefetch=0,
            grid=(N // Bt,),
            in_specs=[
                pl.BlockSpec((Bt, H, WC), lambda b: (b, 0, 0)),
                pl.BlockSpec((C, RPAD), lambda b: (0, 0)),
                pl.BlockSpec((RPAD, C), lambda b: (0, 0)),
                pl.BlockSpec((2 * KSIZE, WC), lambda b: (0, 0)),
                pl.BlockSpec(memory_space=pltpu.MemorySpace.SMEM),
            ],
            out_specs=pl.BlockSpec((Bt, H, WC), lambda b: (b, 0, 0)),
        ),
        compiler_params=pltpu.CompilerParams(
            dimension_semantics=("parallel",),
            vmem_limit_bytes=vmem_limit),
    )(x2, w1p, w2p, masks, wc_flat)

    return out2.reshape(N, H, W, C)


def cbam_ref(x, w1, w2, wconv):
    """Pure-JAX reference mirroring the PyTorch CBAM.forward exactly."""
    nchw = jnp.transpose(x, (0, 3, 1, 2))                     # (N, C, H, W)
    avg = jnp.mean(nchw, axis=(2, 3))                         # (N, C)
    mx = jnp.max(nchw, axis=(2, 3))                           # (N, C)

    def mlp(v):
        return jnp.maximum(v @ w1, 0.0) @ w2

    catt = jax.nn.sigmoid(mlp(avg) + mlp(mx))                 # (N, C)
    nchw = nchw * catt[:, :, None, None]
    y = jnp.transpose(nchw, (0, 2, 3, 1))                     # (N, H, W, C)

    # SpatialAttention applied to NHWC: dim=1 is H, conv over (W, C).
    avg_h = jnp.mean(y, axis=1)                               # (N, W, C)
    max_h = jnp.max(y, axis=1)                                # (N, W, C)
    feat = jnp.stack([avg_h, max_h], axis=1)                  # (N, 2, W, C)
    satt = jax.lax.conv_general_dilated(
        feat, wconv.reshape(1, 2, KSIZE, KSIZE),
        window_strides=(1, 1), padding=((PAD, PAD), (PAD, PAD)),
        dimension_numbers=("NCHW", "OIHW", "NCHW"))           # (N, 1, W, C)
    satt = jax.nn.sigmoid(satt)
    return y * satt                                           # broadcast over H


if __name__ == "__main__":
    N, H, W, C = 2, 8, 8, 32
    reduction_ratio = 16
    Cr = C // reduction_ratio

    key = jax.random.PRNGKey(0)
    kx, k1, k2, k3 = jax.random.split(key, 4)
    x = jax.random.normal(kx, (N, H, W, C), jnp.float32)
    w1 = jax.random.normal(k1, (C, Cr), jnp.float32) * 0.2    # fc1 (transposed)
    w2 = jax.random.normal(k2, (Cr, C), jnp.float32) * 0.2    # fc2 (transposed)
    wconv = jax.random.normal(k3, (2, KSIZE, KSIZE), jnp.float32) * 0.1

    ref = cbam_ref(x, w1, w2, wconv)

    # 1) f32 I/O path: checks the fused math (catt fold, roll trees, conv) exactly.
    out32 = jax.block_until_ready(cbam_pallas(x, w1, w2, wconv, io_dtype=jnp.float32))
    assert out32.shape == (N, H, W, C)
    err32 = float(jnp.max(jnp.abs(out32 - ref)))
    assert err32 < 5e-4, f"f32 max abs error {err32}"

    # 2) bf16 I/O path (default, HBM-bandwidth-optimized).
    out16 = jax.block_until_ready(cbam_pallas(x, w1, w2, wconv))
    assert out16.shape == (N, H, W, C)
    err16 = float(jnp.max(jnp.abs(out16.astype(jnp.float32) - ref)))
    assert err16 < 5e-2, f"bf16 max abs error {err16}"

    print("KERNEL_OK")
</pallas_src>

<mosaic_0001>
module attributes {stable_mosaic.version = 11 : i64} {
  func.func @_probe(%arg0: memref<8x128xf32, #tpu.memory_space<vmem>>, %arg1: memref<8x128xf32, #tpu.memory_space<vmem>>) attributes {dimension_semantics = [], scalar_prefetch = 0 : i64, scratch_operands = 0 : i64, tpu.core_type = #tpu.core_type<tc>} {
    %c0 = arith.constant 0 : index
    %c0_0 = arith.constant 0 : index
    %0 = vector.load %arg0[%c0, %c0_0] : memref<8x128xf32, #tpu.memory_space<vmem>>, vector<8x128xf32>
    %c1_i32 = arith.constant 1 : i32
    %1 = tpu.dynamic_rotate %0 by %c1_i32 dim 1 : vector<8x128xf32>, i32 -> vector<8x128xf32>
    %c0_1 = arith.constant 0 : index
    %c0_2 = arith.constant 0 : index
    %2 = vector.load %arg1[%c0_1, %c0_2] : memref<8x128xf32, #tpu.memory_space<vmem>>, vector<8x128xf32>
    tpu.vector_store %arg1[%c0_1, %c0_2], %1 {strides = array<i32>} : memref<8x128xf32, #tpu.memory_space<vmem>>, vector<8x128xf32>,
    return
  }
}

</mosaic_0001>

<llo_original>
// kernel: tpu_custom_call.1
$region0: #{tpu_custom_call.1}
  #allocation0 [shape = 'u32[]', space=smem, size = 0x4, offset = 0x4, fixed_abs, tag = 'smem constant byte address 0x4 - core index']
  #allocation1 [shape = 'u32[144,128]{1,0:T(1,128)}', space=vmem, size = 0x12000, scoped, tag = 'internal scratch']
  %s0 = inlined_call_operand.hbm [shape: f32[8,128], index: 0, kind: input, shape index: {}]
  %s1 = inlined_call_operand.hbm [shape: f32[8,128], index: 1, kind: output, shape index: {}]
  %s2 = sld [smem:[#allocation0]]
  $region18: #{tpu_custom_call.1} parent=0
    _
  %s4 = ssub.s32 1, %s2
  %s5 = scalar_select 0, %s4, %s2
  $region1: #{tpu_custom_call.1} parent=0
    #allocation2 [shape = 'u8[4096]{0}', space=vmem, size = 0x1000, scoped, tag = 'input window, operand 0, single buffered']
    #allocation3 [shape = 's32[1]{0}', space=sflag, size = 0x4, scoped, tag = 'scoped memory for tpu_custom_call.1']
    #allocation4 [shape = 's32[1]{0}', space=sflag, size = 0x4, scoped, tag = 'scoped memory for tpu_custom_call.1']
    #allocation5 [shape = 'u8[4096]{0}', space=vmem, size = 0x1000, scoped, tag = 'output window, operand 0, single buffered']
    %6 = vsyncpa [#allocation3], 0
    %7 = vsyncpa [#allocation4], 0
    // Predicated region
    $region2: #{tpu_custom_call.1} parent=1 // pred_check
      _
    $region3: #{tpu_custom_call.1} parent=1 // pred_check_branch
      %9 = sbr.rel (0) target = $region5
    $region4: #{tpu_custom_call.1} parent=1 // pred_region
      %s11 = ssub.s32 128, 128
      %12 = vsyncadd [#allocation3], %s11
      %s14 = sshll.u32 [#allocation2], 4
      %s15 = int_to_ptr.vmem [resolvable:$true] %s14
      %17 = dma.hbm_to_vmem [thread:$0]  %s0, 128, %s15, [#allocation3]
    $region5: #{tpu_custom_call.1} parent=1 // pred_fallthru
      _
    // Predicated region
    $region6: #{tpu_custom_call.1} parent=1 // pred_check
      _
    $region7: #{tpu_custom_call.1} parent=1 // pred_check_branch
      %19 = sbr.rel (0) target = $region9
    $region8: #{tpu_custom_call.1} parent=1 // pred_region
      %20 = dma.done [#allocation3], 128
    $region9: #{tpu_custom_call.1} parent=1 // pred_fallthru
      _
    %v21 = vld [vmem:[#allocation2] sm:$0xff]
    %22 = vrot.lane.b32.xlu0 %v21, 1
    %v23 = vpop.permute.xlu0 %22
    %24 = vst [vmem:[#allocation5] sm:$0xff] %v23
    // Predicated region
    $region10: #{tpu_custom_call.1} parent=1 // pred_check
      _
    $region11: #{tpu_custom_call.1} parent=1 // pred_check_branch
      %26 = sbr.rel (0) target = $region13
    $region12: #{tpu_custom_call.1} parent=1 // pred_region
      %s28 = ssub.s32 128, 128
      %29 = vsyncadd [#allocation4], %s28
      %s31 = sshll.u32 [#allocation5], 4
      %s32 = int_to_ptr.vmem [resolvable:$true] %s31
      %34 = dma.vmem_to_hbm [thread:$0]  %s32, 128, %s1, [#allocation4]
    $region13: #{tpu_custom_call.1} parent=1 // pred_fallthru
      _
    // Predicated region
    $region14: #{tpu_custom_call.1} parent=1 // pred_check
      _
    $region15: #{tpu_custom_call.1} parent=1 // pred_check_branch
      %36 = sbr.rel (0) target = $region17
    $region16: #{tpu_custom_call.1} parent=1 // pred_region
      %37 = dma.done [#allocation4], 128
    $region17: #{tpu_custom_call.1} parent=1 // pred_fallthru
      _
    %38 = vsyncpa [#allocation3], 1
    %39 = vsyncpa [#allocation4], 1

</llo_original>
